<compile_context>
chip_gen: v7x
topology: tpu7x:2x2x1
jax: 0.10.0
libtpu: 0.0.40
codegen_flags: <defaults>
</compile_context>

<pallas_src>
import functools

import jax
import jax.numpy as jnp
import numpy as np
from jax import lax
from jax.experimental import pallas as pl
from jax.experimental.pallas import tpu as pltpu


def _dwconv1d_kernel(x_ref, w_ref, o_ref, xp_ref=None, *, kernel_size, stride,
                     mult, padding, t_in, t_out, chunk):
    """One (batch, channel-tile) grid step of the depthwise 1-D convolution.

    x_ref : (1, Ct, T_in)           unpadded input tile (VMEM, auto-pipelined)
    w_ref : (mult, K, Ct, 1)        filter taps, channel on the sublane axis
    o_ref : (1, Ct, mult * T_out)   output tile; lane axis is (m, t) flattened
    xp_ref: (1, Ct, T_in + 2*pad)   zero-padded staging scratch (only when padding > 0)
    """
    ct = x_ref.shape[1]
    K = kernel_size

    # --- stage the input into a zero-padded VMEM scratch (no HBM pad copy) -------------
    if padding > 0:
        zeros_edge = jnp.zeros((1, ct, padding), x_ref.dtype)
        xp_ref[:, :, :padding] = zeros_edge
        xp_ref[:, :, padding + t_in:] = zeros_edge
        xp_ref[:, :, padding:padding + t_in] = x_ref[...]
        src = xp_ref
    else:
        src = x_ref

    # --- load the (tiny) weights once and pre-slice every (m, k) tap (hoisted) ----------
    w = w_ref[...].astype(jnp.float32)                                  # (mult, K, Ct, 1)
    w_mk = [[w[m, k][None] for k in range(K)] for m in range(mult)]     # each (1, Ct, 1)

    # --- time-chunked tap accumulation; each chunk's f32 accumulator stays vreg-sized ---
    n_chunks = (t_out + chunk - 1) // chunk
    for ci in range(n_chunks):
        co = ci * chunk                        # output-time offset of this chunk (static)
        L = min(chunk, t_out - co)             # ragged last chunk (static)
        accs = [jnp.zeros((1, ct, L), jnp.float32) for _ in range(mult)]
        for k in range(K):
            if stride == 1:
                xs = src[:, :, co + k: co + k + L]
            else:
                # stride > 1: correct but slower path (strided slice along the lane dim);
                # not exercised by the demo below (module default stride is 1).
                win = src[:, :, co * stride + k: co * stride + k + (L - 1) * stride + 1]
                xs = lax.slice(win, (0, 0, 0), win.shape, (1, 1, stride))
            xs = xs.astype(jnp.float32)
            for m in range(mult):
                accs[m] = accs[m] + xs * w_mk[m][k]
        for m in range(mult):
            o_ref[:, :, m * t_out + co: m * t_out + co + L] = accs[m].astype(o_ref.dtype)


def _round_up(v, m):
    return ((v + m - 1) // m) * m


def _padded_vmem_bytes(shape, itemsize):
    """Conservative VMEM footprint of one buffer with (sublane, lane) tile padding."""
    s = list(shape)
    s[-1] = _round_up(s[-1], 128)
    if len(s) >= 2:
        s[-2] = _round_up(s[-2], 16)
    return int(np.prod(s)) * int(itemsize)


def depthwise_conv1d(x, weight, *, stride=1, padding=0, c_tile=16, time_chunk=512):
    """Depthwise 1-D conv with torch.nn.Conv1d(groups=in_channels, bias=False) semantics.

    x:      (B, C_in, T)
    weight: (C_out, 1, K) torch layout, with C_out = mult * C_in
    returns (B, C_out, T_out), T_out = (T + 2*padding - K)//stride + 1
    """
    B, C_in, T = x.shape
    C_out, w_in, K = weight.shape
    assert w_in == 1 and C_out % C_in == 0, "expects torch depthwise weight (C_out, 1, K)"
    assert stride >= 1 and padding >= 0
    mult = C_out // C_in
    T_out = (T + 2 * padding - K) // stride + 1
    assert T_out > 0

    # Channel tile: a multiple of 8 (f32 sublane) unless the whole channel axis fits.
    c_tile_eff = C_in if C_in <= c_tile else max(8, (c_tile // 8) * 8)
    chunk = max(1, min(time_chunk, T_out))

    # Weight: (C_out, 1, K) -> (mult, K, C_in, 1); channels land on the sublane axis so
    # the kernel can grab a (Ct, 1) column per (m, k) with zero relayout. Tiny, done once.
    w_r = weight.reshape(C_in, mult, K).transpose(1, 2, 0)[..., None]

    grid = (B, pl.cdiv(C_in, c_tile_eff))

    scratch_shapes = []
    if padding > 0:
        scratch_shapes.append(pltpu.VMEM((1, c_tile_eff, T + 2 * padding), x.dtype))

    kernel = functools.partial(
        _dwconv1d_kernel, kernel_size=K, stride=stride, mult=mult,
        padding=padding, t_in=T, t_out=T_out, chunk=chunk)

    isz = jnp.dtype(x.dtype).itemsize
    wsz = jnp.dtype(w_r.dtype).itemsize
    vmem_needed = (
        2 * _padded_vmem_bytes((1, c_tile_eff, T), isz)
        + 2 * _padded_vmem_bytes((mult, K, c_tile_eff, 1), wsz)
        + 2 * _padded_vmem_bytes((1, c_tile_eff, mult * T_out), isz)
        + (_padded_vmem_bytes((1, c_tile_eff, T + 2 * padding), isz) if padding > 0 else 0))
    vmem_limit = int(min(max(2 * vmem_needed + (2 << 20), 8 << 20), 64 << 20))

    out = pl.pallas_call(
        kernel,
        out_shape=jax.ShapeDtypeStruct((B, C_in, mult * T_out), x.dtype),
        grid=grid,
        in_specs=[
            pl.BlockSpec((1, c_tile_eff, T), lambda b, c: (b, c, 0)),
            pl.BlockSpec((mult, K, c_tile_eff, 1), lambda b, c: (0, 0, c, 0)),
        ],
        out_specs=pl.BlockSpec((1, c_tile_eff, mult * T_out), lambda b, c: (b, c, 0)),
        scratch_shapes=scratch_shapes,
        compiler_params=pltpu.CompilerParams(
            dimension_semantics=("parallel", "parallel"),
            vmem_limit_bytes=vmem_limit),
        cost_estimate=pl.CostEstimate(
            flops=2 * B * C_out * T_out * K,
            transcendentals=0,
            bytes_accessed=int(x.size) * isz + int(w_r.size) * wsz
                           + B * C_out * T_out * isz),
    )(x, w_r)

    # Free, layout-preserving reshape: (B, C_in, mult*T_out) -> (B, C_out, T_out);
    # lane index (m*T_out + t) of channel c is exactly output channel c*mult + m.
    return out.reshape(B, C_out, T_out)


if __name__ == "__main__":
    key = jax.random.PRNGKey(0)
    k1, k2, k3, k4 = jax.random.split(key, 4)

    # Test 1: channel multiplier > 1 (out_channels = 2 * in_channels), padded (scratch path).
    B, C_in, T, mult, K, stride, padding = 2, 4, 16, 2, 3, 1, 1
    C_out = mult * C_in
    x1 = jax.random.normal(k1, (B, C_in, T), dtype=jnp.float32)
    w1 = jax.random.normal(k2, (C_out, 1, K), dtype=jnp.float32) * 0.1
    out1 = jax.block_until_ready(depthwise_conv1d(x1, w1, stride=stride, padding=padding))
    ref1 = lax.conv_general_dilated(
        x1, w1, window_strides=(stride,), padding=[(padding, padding)],
        feature_group_count=C_in, dimension_numbers=("NCH", "OIH", "NCH"))
    assert out1.shape == (B, C_out, (T + 2 * padding - K) // stride + 1)
    np.testing.assert_allclose(np.asarray(out1), np.asarray(ref1), rtol=1e-5, atol=1e-5)

    # Test 2: pure depthwise (mult=1), no padding, multiple channel tiles (one partial)
    # and multiple ragged time chunks.
    B2, C2, T2, K2 = 2, 12, 40, 5
    x2 = jax.random.normal(k3, (B2, C2, T2), dtype=jnp.float32)
    w2 = jax.random.normal(k4, (C2, 1, K2), dtype=jnp.float32) * 0.1
    out2 = jax.block_until_ready(
        depthwise_conv1d(x2, w2, stride=1, padding=0, c_tile=8, time_chunk=16))
    ref2 = lax.conv_general_dilated(
        x2, w2, window_strides=(1,), padding=[(0, 0)],
        feature_group_count=C2, dimension_numbers=("NCH", "OIH", "NCH"))
    np.testing.assert_allclose(np.asarray(out2), np.asarray(ref2), rtol=1e-5, atol=1e-5)

    print("KERNEL_OK")
</pallas_src>

<mosaic_0001>
module attributes {stable_mosaic.version = 11 : i64} {
  func.func @_dwconv1d_kernel(%arg0: i32, %arg1: i32, %arg2: memref<1x4x16xf32, #tpu.memory_space<vmem>>, %arg3: memref<2x3x4x1xf32, #tpu.memory_space<vmem>>, %arg4: memref<1x4x32xf32, #tpu.memory_space<vmem>>, %arg5: memref<1x4x18xf32, #tpu.memory_space<vmem>>) attributes {dimension_semantics = [#tpu.dimension_semantics<parallel>, #tpu.dimension_semantics<parallel>], iteration_bounds = array<i64: 2, 1>, scalar_prefetch = 0 : i64, scratch_operands = 1 : i64, tpu.core_type = #tpu.core_type<tc>, window_params = [{transform_indices = @transform_0, window_bounds = array<i64: 1, 4, 16>}, {transform_indices = @transform_1, window_bounds = array<i64: 2, 3, 4, 1>}, {transform_indices = @transform_2, window_bounds = array<i64: 1, 4, 32>}]} {
    %cst = arith.constant 0.000000e+00 : f32
    %0 = vector.broadcast %cst : f32 to vector<1x4x1xf32>
    %c0 = arith.constant 0 : index
    %c0_0 = arith.constant 0 : index
    %c0_1 = arith.constant 0 : index
    %1 = vector.load %arg5[%c0, %c0_0, %c0_1] : memref<1x4x18xf32, #tpu.memory_space<vmem>>, vector<1x4x1xf32>
    tpu.vector_store %arg5[%c0, %c0_0, %c0_1], %0 {strides = array<i32>} : memref<1x4x18xf32, #tpu.memory_space<vmem>>, vector<1x4x1xf32>,
    %c0_2 = arith.constant 0 : index
    %c0_3 = arith.constant 0 : index
    %c17 = arith.constant 17 : index
    %2 = vector.load %arg5[%c0_2, %c0_3, %c17] : memref<1x4x18xf32, #tpu.memory_space<vmem>>, vector<1x4x1xf32>
    tpu.vector_store %arg5[%c0_2, %c0_3, %c17], %0 {strides = array<i32>} : memref<1x4x18xf32, #tpu.memory_space<vmem>>, vector<1x4x1xf32>,
    %c0_4 = arith.constant 0 : index
    %c0_5 = arith.constant 0 : index
    %c0_6 = arith.constant 0 : index
    %3 = vector.load %arg2[%c0_4, %c0_5, %c0_6] : memref<1x4x16xf32, #tpu.memory_space<vmem>>, vector<1x4x16xf32>
    %c0_7 = arith.constant 0 : index
    %c0_8 = arith.constant 0 : index
    %c1 = arith.constant 1 : index
    %4 = vector.load %arg5[%c0_7, %c0_8, %c1] : memref<1x4x18xf32, #tpu.memory_space<vmem>>, vector<1x4x16xf32>
    tpu.vector_store %arg5[%c0_7, %c0_8, %c1], %3 {strides = array<i32>} : memref<1x4x18xf32, #tpu.memory_space<vmem>>, vector<1x4x16xf32>,
    %c0_9 = arith.constant 0 : index
    %c0_10 = arith.constant 0 : index
    %c0_11 = arith.constant 0 : index
    %c0_12 = arith.constant 0 : index
    %5 = vector.load %arg3[%c0_9, %c0_10, %c0_11, %c0_12] : memref<2x3x4x1xf32, #tpu.memory_space<vmem>>, vector<2x3x4x1xf32>
    %6 = vector.extract_strided_slice %5 {offsets = [0, 0, 0, 0], sizes = [1, 1, 4, 1], strides = [1, 1, 1, 1]} : vector<2x3x4x1xf32> to vector<1x1x4x1xf32>
    %7 = vector.shape_cast %6 : vector<1x1x4x1xf32> to vector<4x1xf32>
    %8 = vector.shape_cast %7 : vector<4x1xf32> to vector<1x4x1xf32>
    %9 = vector.extract_strided_slice %5 {offsets = [0, 1, 0, 0], sizes = [1, 1, 4, 1], strides = [1, 1, 1, 1]} : vector<2x3x4x1xf32> to vector<1x1x4x1xf32>
    %10 = vector.shape_cast %9 : vector<1x1x4x1xf32> to vector<4x1xf32>
    %11 = vector.shape_cast %10 : vector<4x1xf32> to vector<1x4x1xf32>
    %12 = vector.extract_strided_slice %5 {offsets = [0, 2, 0, 0], sizes = [1, 1, 4, 1], strides = [1, 1, 1, 1]} : vector<2x3x4x1xf32> to vector<1x1x4x1xf32>
    %13 = vector.shape_cast %12 : vector<1x1x4x1xf32> to vector<4x1xf32>
    %14 = vector.shape_cast %13 : vector<4x1xf32> to vector<1x4x1xf32>
    %15 = vector.extract_strided_slice %5 {offsets = [1, 0, 0, 0], sizes = [1, 1, 4, 1], strides = [1, 1, 1, 1]} : vector<2x3x4x1xf32> to vector<1x1x4x1xf32>
    %16 = vector.shape_cast %15 : vector<1x1x4x1xf32> to vector<4x1xf32>
    %17 = vector.shape_cast %16 : vector<4x1xf32> to vector<1x4x1xf32>
    %18 = vector.extract_strided_slice %5 {offsets = [1, 1, 0, 0], sizes = [1, 1, 4, 1], strides = [1, 1, 1, 1]} : vector<2x3x4x1xf32> to vector<1x1x4x1xf32>
    %19 = vector.shape_cast %18 : vector<1x1x4x1xf32> to vector<4x1xf32>
    %20 = vector.shape_cast %19 : vector<4x1xf32> to vector<1x4x1xf32>
    %21 = vector.extract_strided_slice %5 {offsets = [1, 2, 0, 0], sizes = [1, 1, 4, 1], strides = [1, 1, 1, 1]} : vector<2x3x4x1xf32> to vector<1x1x4x1xf32>
    %22 = vector.shape_cast %21 : vector<1x1x4x1xf32> to vector<4x1xf32>
    %23 = vector.shape_cast %22 : vector<4x1xf32> to vector<1x4x1xf32>
    %cst_13 = arith.constant 0.000000e+00 : f32
    %24 = vector.broadcast %cst_13 : f32 to vector<1x4x16xf32>
    %cst_14 = arith.constant 0.000000e+00 : f32
    %25 = vector.broadcast %cst_14 : f32 to vector<1x4x16xf32>
    %c0_15 = arith.constant 0 : index
    %c0_16 = arith.constant 0 : index
    %c0_17 = arith.constant 0 : index
    %26 = vector.load %arg5[%c0_15, %c0_16, %c0_17] : memref<1x4x18xf32, #tpu.memory_space<vmem>>, vector<1x4x16xf32>
    %27 = vector.broadcast %8 : vector<1x4x1xf32> to vector<1x4x16xf32>
    %28 = arith.mulf %26, %27 : vector<1x4x16xf32>
    %29 = arith.addf %24, %28 : vector<1x4x16xf32>
    %30 = vector.broadcast %17 : vector<1x4x1xf32> to vector<1x4x16xf32>
    %31 = arith.mulf %26, %30 : vector<1x4x16xf32>
    %32 = arith.addf %25, %31 : vector<1x4x16xf32>
    %c0_18 = arith.constant 0 : index
    %c0_19 = arith.constant 0 : index
    %c1_20 = arith.constant 1 : index
    %33 = vector.load %arg5[%c0_18, %c0_19, %c1_20] : memref<1x4x18xf32, #tpu.memory_space<vmem>>, vector<1x4x16xf32>
    %34 = vector.broadcast %11 : vector<1x4x1xf32> to vector<1x4x16xf32>
    %35 = arith.mulf %33, %34 : vector<1x4x16xf32>
    %36 = arith.addf %29, %35 : vector<1x4x16xf32>
    %37 = vector.broadcast %20 : vector<1x4x1xf32> to vector<1x4x16xf32>
    %38 = arith.mulf %33, %37 : vector<1x4x16xf32>
    %39 = arith.addf %32, %38 : vector<1x4x16xf32>
    %c0_21 = arith.constant 0 : index
    %c0_22 = arith.constant 0 : index
    %c2 = arith.constant 2 : index
    %40 = vector.load %arg5[%c0_21, %c0_22, %c2] : memref<1x4x18xf32, #tpu.memory_space<vmem>>, vector<1x4x16xf32>
    %41 = vector.broadcast %14 : vector<1x4x1xf32> to vector<1x4x16xf32>
    %42 = arith.mulf %40, %41 : vector<1x4x16xf32>
    %43 = arith.addf %36, %42 : vector<1x4x16xf32>
    %44 = vector.broadcast %23 : vector<1x4x1xf32> to vector<1x4x16xf32>
    %45 = arith.mulf %40, %44 : vector<1x4x16xf32>
    %46 = arith.addf %39, %45 : vector<1x4x16xf32>
    %c0_23 = arith.constant 0 : index
    %c0_24 = arith.constant 0 : index
    %c0_25 = arith.constant 0 : index
    %47 = vector.load %arg4[%c0_23, %c0_24, %c0_25] : memref<1x4x32xf32, #tpu.memory_space<vmem>>, vector<1x4x16xf32>
    tpu.vector_store %arg4[%c0_23, %c0_24, %c0_25], %43 {strides = array<i32>} : memref<1x4x32xf32, #tpu.memory_space<vmem>>, vector<1x4x16xf32>,
    %c0_26 = arith.constant 0 : index
    %c0_27 = arith.constant 0 : index
    %c16 = arith.constant 16 : index
    %48 = vector.load %arg4[%c0_26, %c0_27, %c16] : memref<1x4x32xf32, #tpu.memory_space<vmem>>, vector<1x4x16xf32>
    tpu.vector_store %arg4[%c0_26, %c0_27, %c16], %46 {strides = array<i32>} : memref<1x4x32xf32, #tpu.memory_space<vmem>>, vector<1x4x16xf32>,
    return
  }
  func.func @transform_0(%arg0: i32, %arg1: i32) -> (i32, i32, i32) {
    %c0_i32 = arith.constant 0 : i32
    %c0_i32_0 = arith.constant 0 : i32
    return %arg0, %arg1, %c0_i32 : i32, i32, i32
  }
  func.func @transform_1(%arg0: i32, %arg1: i32) -> (i32, i32, i32, i32) {
    %c0_i32 = arith.constant 0 : i32
    %c0_i32_0 = arith.constant 0 : i32
    %c0_i32_1 = arith.constant 0 : i32
    %c0_i32_2 = arith.constant 0 : i32
    return %c0_i32, %c0_i32_0, %arg1, %c0_i32_1 : i32, i32, i32, i32
  }
  func.func @transform_2(%arg0: i32, %arg1: i32) -> (i32, i32, i32) {
    %c0_i32 = arith.constant 0 : i32
    %c0_i32_0 = arith.constant 0 : i32
    return %arg0, %arg1, %c0_i32 : i32, i32, i32
  }
}

</mosaic_0001>

<llo_original>
// kernel: tpu_custom_call.1
$region0: #{tpu_custom_call.1}
  #allocation0 [shape = 'u32[]', space=smem, size = 0x4, offset = 0x4, fixed_abs, tag = 'smem constant byte address 0x4 - core index']
  #allocation1 [shape = 'u32[144,128]{1,0:T(1,128)}', space=vmem, size = 0x12000, scoped, tag = 'internal scratch']
  #allocation2 [shape = 'f32[1,4,18]{2,1,0:T(4,128)}', space=vmem, size = 0x800, scoped, tag = 'scratch operand']
  %s0 = inlined_call_operand.vmem [shape: f32[2,4,16], index: 0, kind: input, shape index: {}]
  %s1 = inlined_call_operand.vmem [shape: f32[2,3,4,1], index: 1, kind: input, shape index: {}]
  %s2 = inlined_call_operand.hbm [shape: f32[2,4,32], index: 2, kind: output, shape index: {}]
  %s3 = sld [smem:[#allocation0]]
  $region41: #{tpu_custom_call.1} parent=0
    _
  %s5 = ssub.s32 1, %s3
  %s6 = scalar_select 0, %s5, %s3
  $region1: #{tpu_custom_call.1} parent=0
    #allocation3 [shape = 'u8[4096]{0}', space=vmem, size = 0x1000, scoped, tag = 'output window, operand 0']
    #allocation4 [shape = 's32[2]{0}', space=sflag, size = 0x8, scoped, tag = 'scoped memory for tpu_custom_call.1']
    %7 = vsyncpa [#allocation4], 0
    %s8 = scalar_lea.sflag [#allocation4], 1
    %9 = vsyncpa %s8, 0
    loop: start=0, step=1, limit=4
    $region2: #{tpu_custom_call.1} parent=1 // loop_pre_header
      _
    $region3: #{tpu_custom_call.1} parent=1 // loop_header
      %s11 = sphi 0, %s15
      %p12 = scmp.ge.s32.totalorder %s11, 4
      %s18 = sphi 0, %s30
      %s19 = sphi 0, %s26
      %s20 = sphi 0, %s18
      %s21 = sphi 0, %s19
      %s22 = sphi 0, %s20
      %s23 = sphi 0, %s21
      %s35 = sphi 0, %s37
      %s38 = sphi 0, %s35
      %s39 = sphi 0, %s38
      %s55 = sphi 0, %s39
      %s61 = sphi 0, %s63
      %s64 = sphi 0, %s61
      %s65 = sphi 0, %s64
      %s81 = sphi 0, %s65
      %s89 = sphi 0, %s91
      %s92 = sphi 0, %s89
      %s93 = sphi 0, %s92
      %s109 = sphi 0, %s93
    $region4: #{tpu_custom_call.1} parent=1 // loop_header_branch
      %14 = sbr.rel (%p12) target = $region8
    $region5: #{tpu_custom_call.1} parent=1 // loop_body
      %s16 = ssub.s32 %s11, 1
      %s17 = ssub.s32 %s11, 2
      %s24 = sadd.s32 1, %s19
      %p25 = scmp.ge.s32.totalorder %s24, 1
      %s26 = scalar_select %p25, 0, %s24
      %s27 = sadd.s32 1, %s18
      %s28 = scalar_select %p25, %s27, %s18
      %p29 = scmp.ge.s32.totalorder %s28, 2
      %s30 = scalar_select %p29, 0, %s28
      %s31 = ssub.s32 %s18, %s30
      %s32 = ssub.s32 %s19, %s26
      %s33 = sor.u32 %s31, %s32
      %p34 = scmp.eq.s32.totalorder %s33, 0
      %s36 = sadd.s32 %s35, 1
      %s37 = scalar_select %p34, %s35, %s36
      %p40 = pneg %p34
      %p41 = scmp.eq.s32.totalorder %s11, 1
      %p42 = por %p40, %p41
      %p43 = scmp.ne.s32.totalorder %s35, %s38
      %p44 = scmp.eq.s32.totalorder %s11, 0
      %p45 = por %p43, %p44
      %p46 = scmp.ne.s32.totalorder %s35, %s38
      %p47 = scmp.eq.s32.totalorder %s16, 1
      %p48 = por %p46, %p47
      %p49 = scmp.ne.s32.totalorder %s38, %s39
      %p50 = scmp.eq.s32.totalorder %s16, 0
      %p51 = por %p49, %p50
      %p52 = scmp.ne.s32.totalorder %s38, %s39
      %p53 = scmp.eq.s32.totalorder %s17, 1
      %p54 = por %p52, %p53
      %p56 = scmp.ne.s32.totalorder %s39, %s55
      %p57 = scmp.eq.s32.totalorder %s17, 0
      %p58 = por %p56, %p57
      %s59 = ssub.s32 %s19, %s26
      %p60 = scmp.eq.s32.totalorder %s59, 0
      %s62 = sadd.s32 %s61, 1
      %s63 = scalar_select %p60, %s61, %s62
      %p66 = pneg %p60
      %p67 = scmp.eq.s32.totalorder %s11, 1
      %p68 = por %p66, %p67
      %p69 = scmp.ne.s32.totalorder %s61, %s64
      %p70 = scmp.eq.s32.totalorder %s11, 0
      %p71 = por %p69, %p70
      %p72 = scmp.ne.s32.totalorder %s61, %s64
      %p73 = scmp.eq.s32.totalorder %s16, 1
      %p74 = por %p72, %p73
      %p75 = scmp.ne.s32.totalorder %s64, %s65
      %p76 = scmp.eq.s32.totalorder %s16, 0
      %p77 = por %p75, %p76
      %p78 = scmp.ne.s32.totalorder %s64, %s65
      %p79 = scmp.eq.s32.totalorder %s17, 1
      %p80 = por %p78, %p79
      %p82 = scmp.ne.s32.totalorder %s65, %s81
      %p83 = scmp.eq.s32.totalorder %s17, 0
      %p84 = por %p82, %p83
      %s85 = ssub.s32 %s18, %s30
      %s86 = ssub.s32 %s19, %s26
      %s87 = sor.u32 %s85, %s86
      %p88 = scmp.eq.s32.totalorder %s87, 0
      %s90 = sadd.s32 %s89, 1
      %s91 = scalar_select %p88, %s89, %s90
      %p94 = pneg %p88
      %p95 = scmp.eq.s32.totalorder %s11, 1
      %p96 = por %p94, %p95
      %p97 = scmp.ne.s32.totalorder %s89, %s92
      %p98 = scmp.eq.s32.totalorder %s11, 0
      %p99 = por %p97, %p98
      %p100 = scmp.ne.s32.totalorder %s89, %s92
      %p101 = scmp.eq.s32.totalorder %s16, 1
      %p102 = por %p100, %p101
      %p103 = scmp.ne.s32.totalorder %s92, %s93
      %p104 = scmp.eq.s32.totalorder %s16, 0
      %p105 = por %p103, %p104
      %p106 = scmp.ne.s32.totalorder %s92, %s93
      %p107 = scmp.eq.s32.totalorder %s17, 1
      %p108 = por %p106, %p107
      %p110 = scmp.ne.s32.totalorder %s93, %s109
      %p111 = scmp.eq.s32.totalorder %s17, 0
      %p112 = por %p110, %p111
      %p113 = scmp.le.s32.totalorder 1, %s11
      %p114 = scmp.lt.s32.totalorder %s11, 3
      %p115 = pnand %p113, %p114
      %p116 = pneg %p115
      // Predicated region
      $region9: #{tpu_custom_call.1} parent=5 // pred_check
        _
      $region10: #{tpu_custom_call.1} parent=5 // pred_check_branch
        %118 = sbr.rel (%p115) target = $region12
      $region11: #{tpu_custom_call.1} parent=5 // pred_region
        %s119 = ssub.s32 %s11, 1
        // Predicated region
        $region13: #{tpu_custom_call.1} parent=11 // pred_check
          %p120 = pneg %p77
        $region14: #{tpu_custom_call.1} parent=11 // pred_check_branch
          %122 = sbr.rel (%p120) target = $region16
        $region15: #{tpu_custom_call.1} parent=11 // pred_region
          %p123 = scmp.lt.s32.totalorder %s21, 0
          %s124 = scalar_select %p123, %s21, 0
          %s125 = smul.addr %s124, 4
          %s126 = scalar_lea.vmem %s1, %s125
        $region16: #{tpu_custom_call.1} parent=11 // pred_fallthru
          _
      $region12: #{tpu_custom_call.1} parent=5 // pred_fallthru
        _
      %p127 = scmp.lt.s32.totalorder %s11, 2
      // Predicated region
      $region17: #{tpu_custom_call.1} parent=5 // pred_check
        %p128 = pneg %p127
      $region18: #{tpu_custom_call.1} parent=5 // pred_check_branch
        %130 = sbr.rel (%p128) target = $region20
      $region19: #{tpu_custom_call.1} parent=5 // pred_region
        // Predicated region
        $region21: #{tpu_custom_call.1} parent=19 // pred_check
          %p131 = pneg %p45
        $region22: #{tpu_custom_call.1} parent=19 // pred_check_branch
          %133 = sbr.rel (%p131) target = $region24
        $region23: #{tpu_custom_call.1} parent=19 // pred_region
          %p134 = scmp.lt.s32.totalorder %s18, 1
          %s135 = scalar_select %p134, %s18, 1
          %p136 = scmp.lt.s32.totalorder %s19, 0
          %s137 = scalar_select %p136, %s19, 0
          %s138 = sadd.s32 %s137, %s135
          %s139 = smul.addr %s138, 4
          %s140 = scalar_lea.vmem %s0, %s139
        $region24: #{tpu_custom_call.1} parent=19 // pred_fallthru
          _
      $region20: #{tpu_custom_call.1} parent=5 // pred_fallthru
        _
      %p141 = scmp.le.s32.totalorder 1, %s11
      %p142 = scmp.lt.s32.totalorder %s11, 3
      %p143 = pnand %p141, %p142
      %p144 = pneg %p143
      // Predicated region
      $region25: #{tpu_custom_call.1} parent=5 // pred_check
        _
      $region26: #{tpu_custom_call.1} parent=5 // pred_check_branch
        %146 = sbr.rel (%p143) target = $region28
      $region27: #{tpu_custom_call.1} parent=5 // pred_region
        %s147 = ssub.s32 %s11, 1
        %p148 = scmp.lt.s32.totalorder %s20, 1
        %s149 = scalar_select %p148, %s20, 1
        %p150 = scmp.lt.s32.totalorder %s21, 0
        %s151 = scalar_select %p150, %s21, 0
        %s152 = sadd.s32 %s151, %s149
        %s153 = smul.addr %s152, 4
        %s154 = scalar_lea.vmem %s0, %s153
        %p155 = pneg %p51
        %p156 = pneg %p48
        %p157 = scmp.lt.s32.totalorder %s21, 0
        %s158 = scalar_select %p157, %s21, 0
        %s159 = smul.addr %s158, 4
        %s160 = scalar_lea.vmem %s1, %s159
        %p161 = pneg %p77
        %p162 = pneg %p74
        %p163 = pneg %p105
        %p164 = pneg %p102
        %s165 = sand.u32 %s92, 1
        %s166 = scalar_lea.sflag [#allocation4], %s165
        %s167 = sand.u32 %s92, 1
        %s168 = smul.addr %s167, 4
        %s169 = scalar_lea.vmem [#allocation3], %s168
        %p170 = scmp.lt.s32.totalorder %s20, 1
        %s171 = scalar_select %p170, %s20, 1
        %p172 = scmp.lt.s32.totalorder %s21, 0
        %s173 = scalar_select %p172, %s21, 0
        %s174 = sadd.s32 %s173, %s171
        %s175 = smul.addr %s174, 4
        %s176 = scalar_lea.vmem %s0, %s175
        %p177 = scmp.lt.s32.totalorder %s21, 0
        %s178 = scalar_select %p177, %s21, 0
        %s179 = smul.addr %s178, 4
        %s180 = scalar_lea.vmem %s1, %s179
        %vm181 = vcmask 3072
        %182 = vst.msk [vmem:[#allocation2] sm:$0xf] %vm181, 0.0
        %vm183 = vcmask 142472
        %184 = vst.msk [vmem:[#allocation2] sm:$0xf] %vm183, 0.0
        %v185 = vld [vmem:[%s176] sm:$0xf]
        %187 = vrot.lane.b32.xlu0 %v185, 1
        %v188 = vpop.permute.xlu0 %187
        %vm190 = vcmask 134152
        %191 = vst.msk [vmem:[#allocation2] sm:$0xf] %vm190, %v188
        %v192 = vld [vmem:[%s180] sm:$0xf]
        %v193 = vld [vmem:[%s180 + $0x4] sm:$0xf]
        %v194 = vld [vmem:[%s180 + $0x8] sm:$0xf]
        %v195 = vld [vmem:[%s180 + $0xc] sm:$0xf]
        %v196 = vld [vmem:[%s180 + $0x10] sm:$0xf]
        %v197 = vld [vmem:[%s180 + $0x14] sm:$0xf]
        %v198 = vld [vmem:[#allocation2] sm:$0xf]
        %200 = vset.pattern.permute.xlu0 0
        %201 = vperm.xlu0 %200, %v192
        %v202 = vpop.permute.xlu0 %201
        %v204 = vmul.f32 %v198, %v202
        %v205 = vadd.f32 %v204, 0.0
        %207 = vset.pattern.permute.xlu0 0
        %208 = vperm.xlu0 %207, %v195
        %v209 = vpop.permute.xlu0 %208
        %v211 = vmul.f32 %v198, %v209
        %v212 = vadd.f32 %v211, 0.0
        %214 = vset.pattern.permute.xlu0 0
        %215 = vperm.xlu0 %214, %v193
        %v216 = vpop.permute.xlu0 %215
        %v218 = vmul.f32 %v198, %v216
        %220 = vrot.lane.b32.xlu0 %v218, 127
        %v221 = vpop.permute.xlu0 %220
        %v223 = vadd.f32 %v205, %v221
        %225 = vset.pattern.permute.xlu0 0
        %226 = vperm.xlu0 %225, %v196
        %v227 = vpop.permute.xlu0 %226
        %v229 = vmul.f32 %v198, %v227
        %231 = vrot.lane.b32.xlu0 %v229, 127
        %v232 = vpop.permute.xlu0 %231
        %v234 = vadd.f32 %v212, %v232
        %236 = vset.pattern.permute.xlu0 0
        %237 = vperm.xlu0 %236, %v194
        %v238 = vpop.permute.xlu0 %237
        %v240 = vmul.f32 %v198, %v238
        %242 = vrot.lane.b32.xlu0 %v240, 126
        %v243 = vpop.permute.xlu0 %242
        %v245 = vadd.f32 %v223, %v243
        %247 = vset.pattern.permute.xlu0 0
        %248 = vperm.xlu0 %247, %v197
        %v249 = vpop.permute.xlu0 %248
        %v251 = vmul.f32 %v198, %v249
        %253 = vrot.lane.b32.xlu0 %v251, 126
        %v254 = vpop.permute.xlu0 %253
        %v256 = vadd.f32 %v234, %v254
        %vm257 = vcmask 125952
        %258 = vst.msk [vmem:[%s169] sm:$0xf] %vm257, %v245
        %260 = vrot.lane.b32.xlu0 %v256, 16
        %v261 = vpop.permute.xlu0 %260
        %vm263 = vcmask 257152
        %264 = vst.msk [vmem:[%s169] sm:$0xf] %vm263, %v261
        %s265 = sand.u32 %s92, 1
        %s266 = scalar_lea.sflag [#allocation4], %s265
        %s267 = sand.u32 %s92, 1
        %s268 = smul.addr %s267, 4
        %s269 = scalar_lea.vmem [#allocation3], %s268
        // Predicated region
        $region29: #{tpu_custom_call.1} parent=27 // pred_check
          %p270 = pneg %p102
        $region30: #{tpu_custom_call.1} parent=27 // pred_check_branch
          %272 = sbr.rel (%p270) target = $region32
        $region31: #{tpu_custom_call.1} parent=27 // pred_region
          %s274 = ssub.s32 64, 64
          %275 = vsyncadd %s266, %s274
          %s276 = sadd.s32 %s21, %s20
          %s277 = smul.addr %s276, 64
          %s278 = scalar_lea.hbm %s2, %s277
          %s280 = sshll.u32 %s269, 4
          %s281 = int_to_ptr.vmem [resolvable:$true] %s280
          %283 = dma.vmem_to_hbm [thread:$0]  %s281, 64, %s278, %s266
        $region32: #{tpu_custom_call.1} parent=27 // pred_fallthru
          _
      $region28: #{tpu_custom_call.1} parent=5 // pred_fallthru
        _
      %p284 = scmp.le.s32.totalorder 2, %s11
      // Predicated region
      $region33: #{tpu_custom_call.1} parent=5 // pred_check
        %p285 = pneg %p284
      $region34: #{tpu_custom_call.1} parent=5 // pred_check_branch
        %287 = sbr.rel (%p285) target = $region36
      $region35: #{tpu_custom_call.1} parent=5 // pred_region
        %s288 = ssub.s32 %s11, 2
        // Predicated region
        $region37: #{tpu_custom_call.1} parent=35 // pred_check
          %p289 = pneg %p108
        $region38: #{tpu_custom_call.1} parent=35 // pred_check_branch
          %291 = sbr.rel (%p289) target = $region40
        $region39: #{tpu_custom_call.1} parent=35 // pred_region
          %s292 = sand.u32 %s93, 1
          %s293 = scalar_lea.sflag [#allocation4], %s292
          %s294 = sand.u32 %s93, 1
          %s295 = smul.addr %s294, 4
          %s296 = scalar_lea.vmem [#allocation3], %s295
          %297 = dma.done %s293, 64
        $region40: #{tpu_custom_call.1} parent=35 // pred_fallthru
          _
      $region36: #{tpu_custom_call.1} parent=5 // pred_fallthru
        _
    $region6: #{tpu_custom_call.1} parent=1 // loop_footer
      %s15 = sadd.s32 1, %s11
    $region7: #{tpu_custom_call.1} parent=1 // loop_footer_branch
      %10 = sbr.rel target = $region3
    $region8: #{tpu_custom_call.1} parent=1 // loop_exit
      _
    %298 = vsyncpa [#allocation4], 1
    %s299 = scalar_lea.sflag [#allocation4], 1
    %300 = vsyncpa %s299, 1

</llo_original>
